<compile_context>
chip_gen: v5e
topology: v5e:2x2
jax: 0.10.0
libtpu: 0.0.40
codegen_flags: <defaults>
</compile_context>

<pallas_src>
import jax
import jax.numpy as jnp
from jax.experimental import pallas as pl
from jax.experimental.pallas import tpu as pltpu


def fuse_fast_to_slow(x_s, x_f, weight, gamma, beta, running_mean, running_var,
                      *, fusion_kernel, alpha, eps=1e-5):
    """x_s: (N, C_s, T_s, H, W), x_f: (N, C_in, T_f, H, W), weight: (C_out, C_in, K)."""
    N, C_s, T_s, H, W = x_s.shape
    Nf, C_in, T_f, Hf, Wf = x_f.shape
    C_out, Cw, K = weight.shape
    assert K == fusion_kernel and Cw == C_in and (N, H, W) == (Nf, Hf, Wf)
    pad = K // 2
    # Conv output length must match the slow pathway's temporal length.
    assert T_s == (T_f + 2 * pad - K) // alpha + 1, \
        "slow/fast temporal shapes inconsistent with (kernel, stride, padding)"
    HW = H * W

    # ---- wrapper glue (no data-moving transform of x_f, nothing touches x_s) ----
    # Natural NCTHW layout with the spatial dims collapsed onto the lane axis.
    xf_nat = x_f.reshape(N, C_in, T_f, HW)            # free collapse of (H, W)

    # Fold BN (inference) scale into the conv weight; bias stays separate.
    inv_std = jax.lax.rsqrt(running_var.astype(jnp.float32) + eps)
    scale = gamma.astype(jnp.float32) * inv_std                       # (C_out,)
    w_sc = weight.astype(jnp.float32) * scale[:, None, None]          # (C_out, C_in, K)
    # k-major flatten: column index = k*C_in + c (matches the in-kernel window rows).
    w_mat = jnp.transpose(w_sc, (0, 2, 1)).reshape(C_out, K * C_in)
    bias = (beta.astype(jnp.float32)
            - running_mean.astype(jnp.float32) * scale).reshape(C_out, 1)

    out_dtype = x_s.dtype

    def kernel(xf_ref, w_ref, b_ref, out_ref):
        # xf_ref: (C_in, T_f, HW)   natural layout, lane dim = HW
        # w_ref:  (C_out, K*C_in)   BN-scale folded, column = k*C_in + c
        # b_ref:  (C_out, 1)        folded BN bias
        # out_ref:(C_out, T_s*HW)   lane-dense output slab
        b = b_ref[...]
        pieces = []
        for t in range(T_s):                       # static unroll (T_s small)
            t0 = t * alpha - pad                   # first fast frame of the window
            k_lo = max(0, -t0)                     # skip taps that fall before frame 0
            k_hi = min(K - 1, T_f - 1 - t0)        # skip taps past the last frame
            # Gather the window's frames onto sublanes (k-major, c within k).
            rhs = jnp.concatenate(
                [xf_ref[:, t0 + k, :] for k in range(k_lo, k_hi + 1)], axis=0)
            wk = w_ref[:, k_lo * C_in:(k_hi + 1) * C_in]             # (C_out, rows)
            acc = jnp.dot(wk, rhs, preferred_element_type=jnp.float32)
            pieces.append(jnp.maximum(acc + b, 0.0))
        # Single lane-dense store: (C_out, T_s*HW).
        out_ref[...] = jnp.concatenate(pieces, axis=1).astype(out_ref.dtype)

    fuse_flat = pl.pallas_call(
        kernel,
        out_shape=jax.ShapeDtypeStruct((N, C_out, T_s * HW), out_dtype),
        grid_spec=pltpu.PrefetchScalarGridSpec(
            num_scalar_prefetch=0,
            grid=(N,),
            in_specs=[
                pl.BlockSpec((None, C_in, T_f, HW), lambda n: (n, 0, 0, 0)),
                pl.BlockSpec((C_out, K * C_in), lambda n: (0, 0)),
                pl.BlockSpec((C_out, 1), lambda n: (0, 0)),
            ],
            out_specs=pl.BlockSpec((None, C_out, T_s * HW), lambda n: (n, 0, 0)),
        ),
        compiler_params=pltpu.CompilerParams(
            dimension_semantics=("parallel",)),
    )(xf_nat, w_mat, bias)

    # Free reshape back to NCTHW; concat with the untouched slow pathway.
    fuse = fuse_flat.reshape(N, C_out, T_s, H, W)
    x_s_fuse = jnp.concatenate([x_s, fuse], axis=1)
    return [x_s_fuse, x_f]


def reference(x_s, x_f, weight, gamma, beta, running_mean, running_var,
              *, fusion_kernel, alpha, eps=1e-5):
    """Pure-JAX reference mirroring the PyTorch forward (eval-mode BN)."""
    C_out, C_in, K = weight.shape
    pad = K // 2
    w5 = weight.reshape(C_out, C_in, K, 1, 1)
    fuse = jax.lax.conv_general_dilated(
        x_f, w5, window_strides=(alpha, 1, 1),
        padding=((pad, pad), (0, 0), (0, 0)),
        dimension_numbers=("NCDHW", "OIDHW", "NCDHW"))
    inv_std = 1.0 / jnp.sqrt(running_var + eps)
    sc = (gamma * inv_std).reshape(1, C_out, 1, 1, 1)
    bi = (beta - running_mean * gamma * inv_std).reshape(1, C_out, 1, 1, 1)
    fuse = jnp.maximum(fuse * sc + bi, 0.0)
    return [jnp.concatenate([x_s, fuse], axis=1), x_f]


if __name__ == "__main__":
    # Small, SlowFast-consistent shapes.
    dim_in = 4                      # fast-pathway channels
    fusion_conv_channel_ratio = 2   # -> C_out = 8
    fusion_kernel = 5
    alpha = 4                       # fast/slow frame-rate ratio
    N, H, W = 2, 8, 8
    T_fast = 16
    T_slow = T_fast // alpha        # 4
    C_slow = 16                     # slow-pathway channels (only concatenated)
    C_out = dim_in * fusion_conv_channel_ratio

    key = jax.random.PRNGKey(0)
    k1, k2, k3, k4, k5, k6, k7 = jax.random.split(key, 7)
    x_s = jax.random.normal(k1, (N, C_slow, T_slow, H, W), jnp.float32)
    x_f = jax.random.normal(k2, (N, dim_in, T_fast, H, W), jnp.float32)
    weight = 0.1 * jax.random.normal(k3, (C_out, dim_in, fusion_kernel), jnp.float32)
    gamma = 1.0 + 0.1 * jax.random.normal(k4, (C_out,), jnp.float32)
    beta = 0.1 * jax.random.normal(k5, (C_out,), jnp.float32)
    running_mean = 0.1 * jax.random.normal(k6, (C_out,), jnp.float32)
    running_var = 0.5 + jnp.abs(jax.random.normal(k7, (C_out,), jnp.float32))

    out_s, out_f = fuse_fast_to_slow(
        x_s, x_f, weight, gamma, beta, running_mean, running_var,
        fusion_kernel=fusion_kernel, alpha=alpha)
    jax.block_until_ready(out_s)
    jax.block_until_ready(out_f)

    ref_s, ref_f = reference(
        x_s, x_f, weight, gamma, beta, running_mean, running_var,
        fusion_kernel=fusion_kernel, alpha=alpha)

    assert out_s.shape == (N, C_slow + C_out, T_slow, H, W)
    assert jnp.allclose(out_s, ref_s, atol=1e-4, rtol=1e-4)
    assert jnp.allclose(out_f, ref_f)
    print("KERNEL_OK")
</pallas_src>

<mosaic_0001>
module attributes {stable_mosaic.version = 11 : i64} {
  func.func @kernel(%arg0: i32, %arg1: memref<1x4x16x64xf32, #tpu.memory_space<vmem>>, %arg2: memref<8x20xf32, #tpu.memory_space<vmem>>, %arg3: memref<8x1xf32, #tpu.memory_space<vmem>>, %arg4: memref<1x8x256xf32, #tpu.memory_space<vmem>>) attributes {dimension_semantics = [#tpu.dimension_semantics<parallel>], iteration_bounds = array<i64: 2>, scalar_prefetch = 0 : i64, scratch_operands = 0 : i64, tpu.core_type = #tpu.core_type<tc>, window_params = [{transform_indices = @transform_0, window_bounds = array<i64: 1, 4, 16, 64>}, {pipeline_mode = #tpu.pipeline_mode<synchronous>, transform_indices = @transform_1, window_bounds = array<i64: 8, 20>}, {pipeline_mode = #tpu.pipeline_mode<synchronous>, transform_indices = @transform_2, window_bounds = array<i64: 8, 1>}, {transform_indices = @transform_3, window_bounds = array<i64: 1, 8, 256>}]} {
    %c0 = arith.constant 0 : index
    %c0_0 = arith.constant 0 : index
    %0 = vector.load %arg3[%c0, %c0_0] : memref<8x1xf32, #tpu.memory_space<vmem>>, vector<8x1xf32>
    %c0_1 = arith.constant 0 : index
    %c0_2 = arith.constant 0 : index
    %c0_3 = arith.constant 0 : index
    %c0_4 = arith.constant 0 : index
    %1 = vector.load %arg1[%c0_1, %c0_2, %c0_3, %c0_4] : memref<1x4x16x64xf32, #tpu.memory_space<vmem>>, vector<1x4x1x64xf32>
    %2 = vector.shape_cast %1 : vector<1x4x1x64xf32> to vector<4x64xf32>
    %c0_5 = arith.constant 0 : index
    %c0_6 = arith.constant 0 : index
    %c1 = arith.constant 1 : index
    %c0_7 = arith.constant 0 : index
    %3 = vector.load %arg1[%c0_5, %c0_6, %c1, %c0_7] : memref<1x4x16x64xf32, #tpu.memory_space<vmem>>, vector<1x4x1x64xf32>
    %4 = vector.shape_cast %3 : vector<1x4x1x64xf32> to vector<4x64xf32>
    %c0_8 = arith.constant 0 : index
    %c0_9 = arith.constant 0 : index
    %c2 = arith.constant 2 : index
    %c0_10 = arith.constant 0 : index
    %5 = vector.load %arg1[%c0_8, %c0_9, %c2, %c0_10] : memref<1x4x16x64xf32, #tpu.memory_space<vmem>>, vector<1x4x1x64xf32>
    %6 = vector.shape_cast %5 : vector<1x4x1x64xf32> to vector<4x64xf32>
    %7 = tpu.concatenate %2, %4, %6 in 0 : vector<4x64xf32>, vector<4x64xf32>, vector<4x64xf32> -> vector<12x64xf32>
    %c0_11 = arith.constant 0 : index
    %c8 = arith.constant 8 : index
    %8 = vector.load %arg2[%c0_11, %c8] : memref<8x20xf32, #tpu.memory_space<vmem>>, vector<8x12xf32>
    %cst = arith.constant dense<0.000000e+00> : vector<8x64xf32>
    %9 = tpu.matmul %8, %7, %cst {dimension_numbers = #tpu.dot_dimension_numbers<[1], [0], [0], [1], [0, 0, 1, 1], [], []>} : vector<8x12xf32>, vector<12x64xf32>, vector<8x64xf32> -> vector<8x64xf32>
    %10 = vector.broadcast %0 : vector<8x1xf32> to vector<8x64xf32>
    %11 = arith.addf %9, %10 : vector<8x64xf32>
    %cst_12 = arith.constant 0.000000e+00 : f32
    %12 = vector.broadcast %cst_12 : f32 to vector<8x64xf32>
    %13 = arith.maximumf %11, %12 : vector<8x64xf32>
    %c0_13 = arith.constant 0 : index
    %c0_14 = arith.constant 0 : index
    %c2_15 = arith.constant 2 : index
    %c0_16 = arith.constant 0 : index
    %14 = vector.load %arg1[%c0_13, %c0_14, %c2_15, %c0_16] : memref<1x4x16x64xf32, #tpu.memory_space<vmem>>, vector<1x4x1x64xf32>
    %15 = vector.shape_cast %14 : vector<1x4x1x64xf32> to vector<4x64xf32>
    %c0_17 = arith.constant 0 : index
    %c0_18 = arith.constant 0 : index
    %c3 = arith.constant 3 : index
    %c0_19 = arith.constant 0 : index
    %16 = vector.load %arg1[%c0_17, %c0_18, %c3, %c0_19] : memref<1x4x16x64xf32, #tpu.memory_space<vmem>>, vector<1x4x1x64xf32>
    %17 = vector.shape_cast %16 : vector<1x4x1x64xf32> to vector<4x64xf32>
    %c0_20 = arith.constant 0 : index
    %c0_21 = arith.constant 0 : index
    %c4 = arith.constant 4 : index
    %c0_22 = arith.constant 0 : index
    %18 = vector.load %arg1[%c0_20, %c0_21, %c4, %c0_22] : memref<1x4x16x64xf32, #tpu.memory_space<vmem>>, vector<1x4x1x64xf32>
    %19 = vector.shape_cast %18 : vector<1x4x1x64xf32> to vector<4x64xf32>
    %c0_23 = arith.constant 0 : index
    %c0_24 = arith.constant 0 : index
    %c5 = arith.constant 5 : index
    %c0_25 = arith.constant 0 : index
    %20 = vector.load %arg1[%c0_23, %c0_24, %c5, %c0_25] : memref<1x4x16x64xf32, #tpu.memory_space<vmem>>, vector<1x4x1x64xf32>
    %21 = vector.shape_cast %20 : vector<1x4x1x64xf32> to vector<4x64xf32>
    %c0_26 = arith.constant 0 : index
    %c0_27 = arith.constant 0 : index
    %c6 = arith.constant 6 : index
    %c0_28 = arith.constant 0 : index
    %22 = vector.load %arg1[%c0_26, %c0_27, %c6, %c0_28] : memref<1x4x16x64xf32, #tpu.memory_space<vmem>>, vector<1x4x1x64xf32>
    %23 = vector.shape_cast %22 : vector<1x4x1x64xf32> to vector<4x64xf32>
    %24 = tpu.concatenate %15, %17, %19, %21, %23 in 0 : vector<4x64xf32>, vector<4x64xf32>, vector<4x64xf32>, vector<4x64xf32>, vector<4x64xf32> -> vector<20x64xf32>
    %c0_29 = arith.constant 0 : index
    %c0_30 = arith.constant 0 : index
    %25 = vector.load %arg2[%c0_29, %c0_30] : memref<8x20xf32, #tpu.memory_space<vmem>>, vector<8x20xf32>
    %cst_31 = arith.constant dense<0.000000e+00> : vector<8x64xf32>
    %26 = tpu.matmul %25, %24, %cst_31 {dimension_numbers = #tpu.dot_dimension_numbers<[1], [0], [0], [1], [0, 0, 1, 1], [], []>} : vector<8x20xf32>, vector<20x64xf32>, vector<8x64xf32> -> vector<8x64xf32>
    %27 = vector.broadcast %0 : vector<8x1xf32> to vector<8x64xf32>
    %28 = arith.addf %26, %27 : vector<8x64xf32>
    %cst_32 = arith.constant 0.000000e+00 : f32
    %29 = vector.broadcast %cst_32 : f32 to vector<8x64xf32>
    %30 = arith.maximumf %28, %29 : vector<8x64xf32>
    %c0_33 = arith.constant 0 : index
    %c0_34 = arith.constant 0 : index
    %c6_35 = arith.constant 6 : index
    %c0_36 = arith.constant 0 : index
    %31 = vector.load %arg1[%c0_33, %c0_34, %c6_35, %c0_36] : memref<1x4x16x64xf32, #tpu.memory_space<vmem>>, vector<1x4x1x64xf32>
    %32 = vector.shape_cast %31 : vector<1x4x1x64xf32> to vector<4x64xf32>
    %c0_37 = arith.constant 0 : index
    %c0_38 = arith.constant 0 : index
    %c7 = arith.constant 7 : index
    %c0_39 = arith.constant 0 : index
    %33 = vector.load %arg1[%c0_37, %c0_38, %c7, %c0_39] : memref<1x4x16x64xf32, #tpu.memory_space<vmem>>, vector<1x4x1x64xf32>
    %34 = vector.shape_cast %33 : vector<1x4x1x64xf32> to vector<4x64xf32>
    %c0_40 = arith.constant 0 : index
    %c0_41 = arith.constant 0 : index
    %c8_42 = arith.constant 8 : index
    %c0_43 = arith.constant 0 : index
    %35 = vector.load %arg1[%c0_40, %c0_41, %c8_42, %c0_43] : memref<1x4x16x64xf32, #tpu.memory_space<vmem>>, vector<1x4x1x64xf32>
    %36 = vector.shape_cast %35 : vector<1x4x1x64xf32> to vector<4x64xf32>
    %c0_44 = arith.constant 0 : index
    %c0_45 = arith.constant 0 : index
    %c9 = arith.constant 9 : index
    %c0_46 = arith.constant 0 : index
    %37 = vector.load %arg1[%c0_44, %c0_45, %c9, %c0_46] : memref<1x4x16x64xf32, #tpu.memory_space<vmem>>, vector<1x4x1x64xf32>
    %38 = vector.shape_cast %37 : vector<1x4x1x64xf32> to vector<4x64xf32>
    %c0_47 = arith.constant 0 : index
    %c0_48 = arith.constant 0 : index
    %c10 = arith.constant 10 : index
    %c0_49 = arith.constant 0 : index
    %39 = vector.load %arg1[%c0_47, %c0_48, %c10, %c0_49] : memref<1x4x16x64xf32, #tpu.memory_space<vmem>>, vector<1x4x1x64xf32>
    %40 = vector.shape_cast %39 : vector<1x4x1x64xf32> to vector<4x64xf32>
    %41 = tpu.concatenate %32, %34, %36, %38, %40 in 0 : vector<4x64xf32>, vector<4x64xf32>, vector<4x64xf32>, vector<4x64xf32>, vector<4x64xf32> -> vector<20x64xf32>
    %c0_50 = arith.constant 0 : index
    %c0_51 = arith.constant 0 : index
    %42 = vector.load %arg2[%c0_50, %c0_51] : memref<8x20xf32, #tpu.memory_space<vmem>>, vector<8x20xf32>
    %cst_52 = arith.constant dense<0.000000e+00> : vector<8x64xf32>
    %43 = tpu.matmul %42, %41, %cst_52 {dimension_numbers = #tpu.dot_dimension_numbers<[1], [0], [0], [1], [0, 0, 1, 1], [], []>} : vector<8x20xf32>, vector<20x64xf32>, vector<8x64xf32> -> vector<8x64xf32>
    %44 = vector.broadcast %0 : vector<8x1xf32> to vector<8x64xf32>
    %45 = arith.addf %43, %44 : vector<8x64xf32>
    %cst_53 = arith.constant 0.000000e+00 : f32
    %46 = vector.broadcast %cst_53 : f32 to vector<8x64xf32>
    %47 = arith.maximumf %45, %46 : vector<8x64xf32>
    %c0_54 = arith.constant 0 : index
    %c0_55 = arith.constant 0 : index
    %c10_56 = arith.constant 10 : index
    %c0_57 = arith.constant 0 : index
    %48 = vector.load %arg1[%c0_54, %c0_55, %c10_56, %c0_57] : memref<1x4x16x64xf32, #tpu.memory_space<vmem>>, vector<1x4x1x64xf32>
    %49 = vector.shape_cast %48 : vector<1x4x1x64xf32> to vector<4x64xf32>
    %c0_58 = arith.constant 0 : index
    %c0_59 = arith.constant 0 : index
    %c11 = arith.constant 11 : index
    %c0_60 = arith.constant 0 : index
    %50 = vector.load %arg1[%c0_58, %c0_59, %c11, %c0_60] : memref<1x4x16x64xf32, #tpu.memory_space<vmem>>, vector<1x4x1x64xf32>
    %51 = vector.shape_cast %50 : vector<1x4x1x64xf32> to vector<4x64xf32>
    %c0_61 = arith.constant 0 : index
    %c0_62 = arith.constant 0 : index
    %c12 = arith.constant 12 : index
    %c0_63 = arith.constant 0 : index
    %52 = vector.load %arg1[%c0_61, %c0_62, %c12, %c0_63] : memref<1x4x16x64xf32, #tpu.memory_space<vmem>>, vector<1x4x1x64xf32>
    %53 = vector.shape_cast %52 : vector<1x4x1x64xf32> to vector<4x64xf32>
    %c0_64 = arith.constant 0 : index
    %c0_65 = arith.constant 0 : index
    %c13 = arith.constant 13 : index
    %c0_66 = arith.constant 0 : index
    %54 = vector.load %arg1[%c0_64, %c0_65, %c13, %c0_66] : memref<1x4x16x64xf32, #tpu.memory_space<vmem>>, vector<1x4x1x64xf32>
    %55 = vector.shape_cast %54 : vector<1x4x1x64xf32> to vector<4x64xf32>
    %c0_67 = arith.constant 0 : index
    %c0_68 = arith.constant 0 : index
    %c14 = arith.constant 14 : index
    %c0_69 = arith.constant 0 : index
    %56 = vector.load %arg1[%c0_67, %c0_68, %c14, %c0_69] : memref<1x4x16x64xf32, #tpu.memory_space<vmem>>, vector<1x4x1x64xf32>
    %57 = vector.shape_cast %56 : vector<1x4x1x64xf32> to vector<4x64xf32>
    %58 = tpu.concatenate %49, %51, %53, %55, %57 in 0 : vector<4x64xf32>, vector<4x64xf32>, vector<4x64xf32>, vector<4x64xf32>, vector<4x64xf32> -> vector<20x64xf32>
    %c0_70 = arith.constant 0 : index
    %c0_71 = arith.constant 0 : index
    %59 = vector.load %arg2[%c0_70, %c0_71] : memref<8x20xf32, #tpu.memory_space<vmem>>, vector<8x20xf32>
    %cst_72 = arith.constant dense<0.000000e+00> : vector<8x64xf32>
    %60 = tpu.matmul %59, %58, %cst_72 {dimension_numbers = #tpu.dot_dimension_numbers<[1], [0], [0], [1], [0, 0, 1, 1], [], []>} : vector<8x20xf32>, vector<20x64xf32>, vector<8x64xf32> -> vector<8x64xf32>
    %61 = vector.broadcast %0 : vector<8x1xf32> to vector<8x64xf32>
    %62 = arith.addf %60, %61 : vector<8x64xf32>
    %cst_73 = arith.constant 0.000000e+00 : f32
    %63 = vector.broadcast %cst_73 : f32 to vector<8x64xf32>
    %64 = arith.maximumf %62, %63 : vector<8x64xf32>
    %65 = tpu.concatenate %13, %30, %47, %64 in 1 : vector<8x64xf32>, vector<8x64xf32>, vector<8x64xf32>, vector<8x64xf32> -> vector<8x256xf32>
    %c0_74 = arith.constant 0 : index
    %c0_75 = arith.constant 0 : index
    %c0_76 = arith.constant 0 : index
    %66 = vector.load %arg4[%c0_74, %c0_75, %c0_76] : memref<1x8x256xf32, #tpu.memory_space<vmem>>, vector<1x8x256xf32>
    %67 = vector.shape_cast %66 : vector<1x8x256xf32> to vector<8x256xf32>
    %68 = vector.shape_cast %65 : vector<8x256xf32> to vector<1x8x256xf32>
    tpu.vector_store %arg4[%c0_74, %c0_75, %c0_76], %68 {strides = array<i32>} : memref<1x8x256xf32, #tpu.memory_space<vmem>>, vector<1x8x256xf32>,
    return
  }
  func.func @transform_0(%arg0: i32) -> (i32, i32, i32, i32) {
    %c0_i32 = arith.constant 0 : i32
    %c0_i32_0 = arith.constant 0 : i32
    %c0_i32_1 = arith.constant 0 : i32
    %c0_i32_2 = arith.constant 0 : i32
    return %arg0, %c0_i32, %c0_i32_0, %c0_i32_1 : i32, i32, i32, i32
  }
  func.func @transform_1(%arg0: i32) -> (i32, i32) {
    %c0_i32 = arith.constant 0 : i32
    %c0_i32_0 = arith.constant 0 : i32
    %c0_i32_1 = arith.constant 0 : i32
    return %c0_i32, %c0_i32_0 : i32, i32
  }
  func.func @transform_2(%arg0: i32) -> (i32, i32) {
    %c0_i32 = arith.constant 0 : i32
    %c0_i32_0 = arith.constant 0 : i32
    %c0_i32_1 = arith.constant 0 : i32
    return %c0_i32, %c0_i32_0 : i32, i32
  }
  func.func @transform_3(%arg0: i32) -> (i32, i32, i32) {
    %c0_i32 = arith.constant 0 : i32
    %c0_i32_0 = arith.constant 0 : i32
    %c0_i32_1 = arith.constant 0 : i32
    return %arg0, %c0_i32, %c0_i32_0 : i32, i32, i32
  }
}

</mosaic_0001>

<llo_original>
// kernel: tpu_custom_call.1
$region0: #{tpu_custom_call.1}
  #allocation0 [shape = 'u32[]', space=smem, size = 0x4, offset = 0x4, fixed_abs, tag = 'smem constant byte address 0x4 - core index']
  #allocation1 [shape = 'u32[72,128]{1,0:T(1,128)}', space=vmem, size = 0x9000, scoped, tag = 'internal scratch']
  %s0 = inlined_call_operand.hbm [shape: f32[2,4,16,64], index: 0, kind: input, shape index: {}]
  %s1 = inlined_call_operand.vmem [shape: f32[8,20], index: 1, kind: input, shape index: {}]
  %s2 = inlined_call_operand.vmem [shape: f32[8,1], index: 2, kind: input, shape index: {}]
  %s3 = inlined_call_operand.hbm [shape: f32[2,8,256], index: 3, kind: output, shape index: {}]
  %s4 = sld [smem:[#allocation0]]
  $region49: #{tpu_custom_call.1} parent=0
    _
  %s6 = ssub.s32 1, %s4
  %s7 = scalar_select 0, %s6, %s4
  $region1: #{tpu_custom_call.1} parent=0
    #allocation2 [shape = 'u8[65536]{0}', space=vmem, size = 0x10000, scoped, tag = 'input window, operand 0']
    #allocation3 [shape = 's32[2]{0}', space=sflag, size = 0x8, scoped, tag = 'scoped memory for tpu_custom_call.1']
    #allocation4 [shape = 's32[2]{0}', space=sflag, size = 0x8, scoped, tag = 'scoped memory for tpu_custom_call.1']
    #allocation5 [shape = 'u8[16384]{0}', space=vmem, size = 0x4000, scoped, tag = 'output window, operand 0']
    %8 = vsyncpa [#allocation3], 0
    %s9 = scalar_lea.sflag [#allocation3], 1
    %10 = vsyncpa %s9, 0
    %11 = vsyncpa [#allocation4], 0
    %s12 = scalar_lea.sflag [#allocation4], 1
    %13 = vsyncpa %s12, 0
    loop: start=0, step=1, limit=4
    $region2: #{tpu_custom_call.1} parent=1 // loop_pre_header
      _
    $region3: #{tpu_custom_call.1} parent=1 // loop_header
      %s15 = sphi 0, %s19
      %p16 = scmp.ge.s32.totalorder %s15, 4
      %s25 = sphi 0, %s27
      %s28 = sphi 0, %s25
      %s29 = sphi 0, %s28
      %s45 = sphi 0, %s29
      %s49 = sphi 0, %s49
      %s51 = sphi 0, %s49
      %s52 = sphi 0, %s51
      %s66 = sphi 0, %s52
      %s70 = sphi 0, %s70
      %s72 = sphi 0, %s70
      %s73 = sphi 0, %s72
      %s87 = sphi 0, %s73
      %s93 = sphi 0, %s95
      %s96 = sphi 0, %s93
      %s97 = sphi 0, %s96
      %s113 = sphi 0, %s97
    $region4: #{tpu_custom_call.1} parent=1 // loop_header_branch
      %18 = sbr.rel (%p16) target = $region8
    $region5: #{tpu_custom_call.1} parent=1 // loop_body
      %s20 = ssub.s32 %s15, 1
      %s21 = ssub.s32 %s15, 2
      %s22 = sadd.s32 %s15, 1
      %s23 = ssub.s32 %s15, %s22
      %p24 = scmp.eq.s32.totalorder %s23, 0
      %s26 = sadd.s32 %s25, 1
      %s27 = scalar_select %p24, %s25, %s26
      %p30 = pneg %p24
      %p31 = scmp.eq.s32.totalorder %s15, 1
      %p32 = por %p30, %p31
      %p33 = scmp.ne.s32.totalorder %s25, %s28
      %p34 = scmp.eq.s32.totalorder %s15, 0
      %p35 = por %p33, %p34
      %p36 = scmp.ne.s32.totalorder %s25, %s28
      %p37 = scmp.eq.s32.totalorder %s20, 1
      %p38 = por %p36, %p37
      %p39 = scmp.ne.s32.totalorder %s28, %s29
      %p40 = scmp.eq.s32.totalorder %s20, 0
      %p41 = por %p39, %p40
      %p42 = scmp.ne.s32.totalorder %s28, %s29
      %p43 = scmp.eq.s32.totalorder %s21, 1
      %p44 = por %p42, %p43
      %p46 = scmp.ne.s32.totalorder %s29, %s45
      %p47 = scmp.eq.s32.totalorder %s21, 0
      %p48 = por %p46, %p47
      %s50 = sadd.s32 %s49, 1
      %p53 = scmp.eq.s32.totalorder %s15, 1
      %p54 = scmp.ne.s32.totalorder %s49, %s51
      %p55 = scmp.eq.s32.totalorder %s15, 0
      %p56 = por %p54, %p55
      %p57 = scmp.ne.s32.totalorder %s49, %s51
      %p58 = scmp.eq.s32.totalorder %s20, 1
      %p59 = por %p57, %p58
      %p60 = scmp.ne.s32.totalorder %s51, %s52
      %p61 = scmp.eq.s32.totalorder %s20, 0
      %p62 = por %p60, %p61
      %p63 = scmp.ne.s32.totalorder %s51, %s52
      %p64 = scmp.eq.s32.totalorder %s21, 1
      %p65 = por %p63, %p64
      %p67 = scmp.ne.s32.totalorder %s52, %s66
      %p68 = scmp.eq.s32.totalorder %s21, 0
      %p69 = por %p67, %p68
      %s71 = sadd.s32 %s70, 1
      %p74 = scmp.eq.s32.totalorder %s15, 1
      %p75 = scmp.ne.s32.totalorder %s70, %s72
      %p76 = scmp.eq.s32.totalorder %s15, 0
      %p77 = por %p75, %p76
      %p78 = scmp.ne.s32.totalorder %s70, %s72
      %p79 = scmp.eq.s32.totalorder %s20, 1
      %p80 = por %p78, %p79
      %p81 = scmp.ne.s32.totalorder %s72, %s73
      %p82 = scmp.eq.s32.totalorder %s20, 0
      %p83 = por %p81, %p82
      %p84 = scmp.ne.s32.totalorder %s72, %s73
      %p85 = scmp.eq.s32.totalorder %s21, 1
      %p86 = por %p84, %p85
      %p88 = scmp.ne.s32.totalorder %s73, %s87
      %p89 = scmp.eq.s32.totalorder %s21, 0
      %p90 = por %p88, %p89
      %s91 = ssub.s32 %s15, %s22
      %p92 = scmp.eq.s32.totalorder %s91, 0
      %s94 = sadd.s32 %s93, 1
      %s95 = scalar_select %p92, %s93, %s94
      %p98 = pneg %p92
      %p99 = scmp.eq.s32.totalorder %s15, 1
      %p100 = por %p98, %p99
      %p101 = scmp.ne.s32.totalorder %s93, %s96
      %p102 = scmp.eq.s32.totalorder %s15, 0
      %p103 = por %p101, %p102
      %p104 = scmp.ne.s32.totalorder %s93, %s96
      %p105 = scmp.eq.s32.totalorder %s20, 1
      %p106 = por %p104, %p105
      %p107 = scmp.ne.s32.totalorder %s96, %s97
      %p108 = scmp.eq.s32.totalorder %s20, 0
      %p109 = por %p107, %p108
      %p110 = scmp.ne.s32.totalorder %s96, %s97
      %p111 = scmp.eq.s32.totalorder %s21, 1
      %p112 = por %p110, %p111
      %p114 = scmp.ne.s32.totalorder %s97, %s113
      %p115 = scmp.eq.s32.totalorder %s21, 0
      %p116 = por %p114, %p115
      %p117 = scmp.le.s32.totalorder 1, %s15
      %p118 = scmp.lt.s32.totalorder %s15, 3
      %p119 = pnand %p117, %p118
      %p120 = pneg %p119
      // Predicated region
      $region9: #{tpu_custom_call.1} parent=5 // pred_check
        _
      $region10: #{tpu_custom_call.1} parent=5 // pred_check_branch
        %122 = sbr.rel (%p119) target = $region12
      $region11: #{tpu_custom_call.1} parent=5 // pred_region
        %s123 = ssub.s32 %s15, 1
        // Predicated region
        $region13: #{tpu_custom_call.1} parent=11 // pred_check
          %p124 = pneg %p62
        $region14: #{tpu_custom_call.1} parent=11 // pred_check_branch
          %126 = sbr.rel (%p124) target = $region16
        $region15: #{tpu_custom_call.1} parent=11 // pred_region
          _
        $region16: #{tpu_custom_call.1} parent=11 // pred_fallthru
          _
        // Predicated region
        $region17: #{tpu_custom_call.1} parent=11 // pred_check
          %p127 = pneg %p83
        $region18: #{tpu_custom_call.1} parent=11 // pred_check_branch
          %129 = sbr.rel (%p127) target = $region20
        $region19: #{tpu_custom_call.1} parent=11 // pred_region
          _
        $region20: #{tpu_custom_call.1} parent=11 // pred_fallthru
          _
      $region12: #{tpu_custom_call.1} parent=5 // pred_fallthru
        _
      %p130 = scmp.lt.s32.totalorder %s15, 2
      // Predicated region
      $region21: #{tpu_custom_call.1} parent=5 // pred_check
        %p131 = pneg %p130
      $region22: #{tpu_custom_call.1} parent=5 // pred_check_branch
        %133 = sbr.rel (%p131) target = $region24
      $region23: #{tpu_custom_call.1} parent=5 // pred_region
        // Predicated region
        $region25: #{tpu_custom_call.1} parent=23 // pred_check
          %p134 = pneg %p35
        $region26: #{tpu_custom_call.1} parent=23 // pred_check_branch
          %136 = sbr.rel (%p134) target = $region28
        $region27: #{tpu_custom_call.1} parent=23 // pred_region
          %s137 = sand.u32 %s25, 1
          %s138 = scalar_lea.sflag [#allocation3], %s137
          %s139 = sand.u32 %s25, 1
          %s140 = smul.addr %s139, 64
          %s141 = scalar_lea.vmem [#allocation2], %s140
          %143 = vsyncadd %s138, 0
          %s144 = smul.addr %s15, 8
          %s145 = smul.addr %s144, 8
          %s146 = scalar_lea.hbm %s0, %s145
          %s147 = sshll.u32 %s146, 4
          %s148 = int_to_ptr.hbm [resolvable:$true] %s147
          %s149 = sshll.u32 %s141, 4
          %s150 = int_to_ptr.vmem [resolvable:$true] %s149
          %155 = dma.hbm_to_vmem [thread:$0]  %s148, 1024, %s150, %s138, 128, 128, 8
        $region28: #{tpu_custom_call.1} parent=23 // pred_fallthru
          _
      $region24: #{tpu_custom_call.1} parent=5 // pred_fallthru
        _
      %p156 = scmp.le.s32.totalorder 1, %s15
      %p157 = scmp.lt.s32.totalorder %s15, 3
      %p158 = pnand %p156, %p157
      %p159 = pneg %p158
      // Predicated region
      $region29: #{tpu_custom_call.1} parent=5 // pred_check
        _
      $region30: #{tpu_custom_call.1} parent=5 // pred_check_branch
        %161 = sbr.rel (%p158) target = $region32
      $region31: #{tpu_custom_call.1} parent=5 // pred_region
        %s162 = ssub.s32 %s15, 1
        %s163 = sand.u32 %s28, 1
        %s164 = scalar_lea.sflag [#allocation3], %s163
        %s165 = sand.u32 %s28, 1
        %s166 = smul.addr %s165, 64
        %s167 = scalar_lea.vmem [#allocation2], %s166
        // Predicated region
        $region33: #{tpu_custom_call.1} parent=31 // pred_check
          %p168 = pneg %p41
        $region34: #{tpu_custom_call.1} parent=31 // pred_check_branch
          %170 = sbr.rel (%p168) target = $region36
        $region35: #{tpu_custom_call.1} parent=31 // pred_region
          %172 = dma.done %s164, 1024
        $region36: #{tpu_custom_call.1} parent=31 // pred_fallthru
          _
        %s173 = sand.u32 %s28, 1
        %s174 = scalar_lea.sflag [#allocation3], %s173
        %s175 = sand.u32 %s28, 1
        %s176 = smul.addr %s175, 64
        %s177 = scalar_lea.vmem [#allocation2], %s176
        %p178 = pneg %p41
        %p179 = pneg %p38
        %p180 = pneg %p62
        %p181 = pneg %p59
        %p182 = pneg %p83
        %p183 = pneg %p80
        %p184 = pneg %p109
        %p185 = pneg %p106
        %s186 = sand.u32 %s96, 1
        %s187 = scalar_lea.sflag [#allocation4], %s186
        %s188 = sand.u32 %s96, 1
        %s189 = smul.addr %s188, 16
        %s190 = scalar_lea.vmem [#allocation5], %s189
        %v191 = vld [vmem:[%s2] sm:$0xff]
        %v192 = vld [vmem:[%s167] sm:$0x1]
        %v193 = vld [vmem:[%s167 + $0x10] sm:$0x1]
        %v194 = vld [vmem:[%s167 + $0x20] sm:$0x1]
        %v195 = vld [vmem:[%s167 + $0x30] sm:$0x1]
        %v196 = vld [vmem:[%s167 + $0x1] sm:$0x1]
        %v197 = vld [vmem:[%s167 + $0x11] sm:$0x1]
        %v198 = vld [vmem:[%s167 + $0x21] sm:$0x1]
        %v199 = vld [vmem:[%s167 + $0x31] sm:$0x1]
        %v200 = vld [vmem:[%s167 + $0x2] sm:$0x1]
        %v201 = vld [vmem:[%s167 + $0x12] sm:$0x1]
        %v202 = vld [vmem:[%s167 + $0x22] sm:$0x1]
        %v203 = vld [vmem:[%s167 + $0x32] sm:$0x1]
        %v208 = vrot.slane %v193, 7
        %vm209 = vcmask 1041409
        %v210 = vsel %vm209, %v208, %v192
        %v211 = vrot.slane %v194, 6
        %vm212 = vcmask 1042434
        %v213 = vsel %vm212, %v211, %v210
        %v214 = vrot.slane %v195, 5
        %vm215 = vcmask 1043459
        %v216 = vsel %vm215, %v214, %v213
        %v222 = vrot.slane %v196, 4
        %v223 = vrot.slane %v197, 3
        %vm224 = vcmask 1045509
        %v225 = vsel %vm224, %v223, %v222
        %v226 = vrot.slane %v198, 2
        %vm227 = vcmask 1046534
        %v228 = vsel %vm227, %v226, %v225
        %v229 = vrot.slane %v199, 1
        %vm230 = vcmask 1047559
        %v231 = vsel %vm230, %v229, %v228
        %v237 = vrot.slane %v201, 7
        %v238 = vsel %vm209, %v237, %v200
        %v239 = vrot.slane %v202, 6
        %v240 = vsel %vm212, %v239, %v238
        %v241 = vrot.slane %v203, 5
        %v242 = vsel %vm215, %v241, %v240
        %vm243 = vcmask 1043456
        %v244 = vsel %vm243, %v216, %v231
        %v245 = vld [vmem:[%s1] sm:$0xff]
        %247 = vset.pattern.permute.xlu0 0
        %248 = vperm.xlu0 %247, %v191
        %v249 = vpop.permute.xlu0 %248
        %252 = vrot.lane.b32.xlu0 %v245, 120
        %v253 = vpop.permute.xlu0 %252
        %vm254 = vcmask 97280
        %v255 = vsel %vm254, %v253, 0
        %v257 = vsel %vm243, %v242, 0
        %259 = vmatpush.msra.mxu0 0.0
        %260 = vmatpush.msra.mxu0 0.0
        %261 = vmatpush.msra.mxu0 0.0
        %262 = vmatpush.msra.mxu0 0.0
        %263 = vmatpush.msra.mxu0 0.0
        %264 = vmatpush.msra.mxu0 0.0
        %265 = vmatpush.msra.mxu0 0.0
        %266 = vmatpush.msra.mxu0 0.0
        %267 = vmatpush.msra.mxu0 0.0
        %268 = vmatpush.msra.mxu0 0.0
        %269 = vmatpush.msra.mxu0 0.0
        %270 = vmatpush.msra.mxu0 0.0
        %271 = vmatpush.msra.mxu0 0.0
        %272 = vmatpush.msra.mxu0 0.0
        %273 = vmatpush.msra.mxu0 %v257
        %274 = vmatpush.msra.mxu0 %v244
        %275 = vmatmul.f32.gmra.mxu0 %v255
        %v276 = vpop.f32.mrf.mxu0
        %v277 = vadd.f32 %v249, %v276
        %278 = vdwg.mxu0
        %v279 = vmax.f32 %v277, 0.0
        %v280 = vld [vmem:[%s167 + $0x3] sm:$0x1]
        %v281 = vld [vmem:[%s167 + $0x13] sm:$0x1]
        %v282 = vld [vmem:[%s167 + $0x23] sm:$0x1]
        %v283 = vld [vmem:[%s167 + $0x33] sm:$0x1]
        %v284 = vld [vmem:[%s167 + $0x4] sm:$0x1]
        %v285 = vld [vmem:[%s167 + $0x14] sm:$0x1]
        %v286 = vld [vmem:[%s167 + $0x24] sm:$0x1]
        %v287 = vld [vmem:[%s167 + $0x34] sm:$0x1]
        %v288 = vld [vmem:[%s167 + $0x5] sm:$0x1]
        %v289 = vld [vmem:[%s167 + $0x15] sm:$0x1]
        %v290 = vld [vmem:[%s167 + $0x25] sm:$0x1]
        %v291 = vld [vmem:[%s167 + $0x35] sm:$0x1]
        %v292 = vld [vmem:[%s167 + $0x6] sm:$0x1]
        %v293 = vld [vmem:[%s167 + $0x16] sm:$0x1]
        %v294 = vld [vmem:[%s167 + $0x26] sm:$0x1]
        %v295 = vld [vmem:[%s167 + $0x36] sm:$0x1]
        %v301 = vrot.slane %v280, 4
        %v302 = vrot.slane %v281, 3
        %v303 = vsel %vm224, %v302, %v301
        %v304 = vrot.slane %v282, 2
        %v305 = vsel %vm227, %v304, %v303
        %v306 = vrot.slane %v283, 1
        %v307 = vsel %vm230, %v306, %v305
        %v313 = vrot.slane %v285, 7
        %v314 = vsel %vm209, %v313, %v284
        %v315 = vrot.slane %v286, 6
        %v316 = vsel %vm212, %v315, %v314
        %v317 = vrot.slane %v287, 5
        %v318 = vsel %vm215, %v317, %v316
        %v324 = vrot.slane %v288, 4
        %v325 = vrot.slane %v289, 3
        %v326 = vsel %vm224, %v325, %v324
        %v327 = vrot.slane %v290, 2
        %v328 = vsel %vm227, %v327, %v326
        %v329 = vrot.slane %v291, 1
        %v330 = vsel %vm230, %v329, %v328
        %v336 = vrot.slane %v293, 7
        %v337 = vsel %vm209, %v336, %v292
        %v338 = vrot.slane %v294, 6
        %v339 = vsel %vm212, %v338, %v337
        %v340 = vrot.slane %v295, 5
        %v341 = vsel %vm215, %v340, %v339
        %v342 = vsel %vm243, %v242, %v307
        %v343 = vsel %vm243, %v318, %v330
        %vm344 = vcmask 162816
        %v345 = vsel %vm344, %v245, 0
        %v347 = vsel %vm243, %v341, 0
        %349 = vmatpush.msra.mxu0 0.0
        %350 = vmatpush.msra.mxu0 0.0
        %351 = vmatpush.msra.mxu0 0.0
        %352 = vmatpush.msra.mxu0 0.0
        %353 = vmatpush.msra.mxu0 0.0
        %354 = vmatpush.msra.mxu0 0.0
        %355 = vmatpush.msra.mxu0 0.0
        %356 = vmatpush.msra.mxu0 0.0
        %357 = vmatpush.msra.mxu0 0.0
        %358 = vmatpush.msra.mxu0 0.0
        %359 = vmatpush.msra.mxu0 0.0
        %360 = vmatpush.msra.mxu0 0.0
        %361 = vmatpush.msra.mxu0 0.0
        %362 = vmatpush.msra.mxu0 %v347
        %363 = vmatpush.msra.mxu0 %v343
        %364 = vmatpush.msra.mxu0 %v342
        %365 = vmatmul.f32.gmra.mxu0 %v345
        %v366 = vpop.f32.mrf.mxu0
        %v367 = vadd.f32 %v249, %v366
        %368 = vdwg.mxu0
        %v369 = vmax.f32 %v367, 0.0
        %v370 = vld [vmem:[%s167 + $0x7] sm:$0x1]
        %v371 = vld [vmem:[%s167 + $0x17] sm:$0x1]
        %v372 = vld [vmem:[%s167 + $0x27] sm:$0x1]
        %v373 = vld [vmem:[%s167 + $0x37] sm:$0x1]
        %v374 = vld [vmem:[%s167 + $0x8] sm:$0x1]
        %v375 = vld [vmem:[%s167 + $0x18] sm:$0x1]
        %v376 = vld [vmem:[%s167 + $0x28] sm:$0x1]
        %v377 = vld [vmem:[%s167 + $0x38] sm:$0x1]
        %v378 = vld [vmem:[%s167 + $0x9] sm:$0x1]
        %v379 = vld [vmem:[%s167 + $0x19] sm:$0x1]
        %v380 = vld [vmem:[%s167 + $0x29] sm:$0x1]
        %v381 = vld [vmem:[%s167 + $0x39] sm:$0x1]
        %v382 = vld [vmem:[%s167 + $0xa] sm:$0x1]
        %v383 = vld [vmem:[%s167 + $0x1a] sm:$0x1]
        %v384 = vld [vmem:[%s167 + $0x2a] sm:$0x1]
        %v385 = vld [vmem:[%s167 + $0x3a] sm:$0x1]
        %v391 = vrot.slane %v370, 4
        %v392 = vrot.slane %v371, 3
        %v393 = vsel %vm224, %v392, %v391
        %v394 = vrot.slane %v372, 2
        %v395 = vsel %vm227, %v394, %v393
        %v396 = vrot.slane %v373, 1
        %v397 = vsel %vm230, %v396, %v395
        %v403 = vrot.slane %v375, 7
        %v404 = vsel %vm209, %v403, %v374
        %v405 = vrot.slane %v376, 6
        %v406 = vsel %vm212, %v405, %v404
        %v407 = vrot.slane %v377, 5
        %v408 = vsel %vm215, %v407, %v406
        %v414 = vrot.slane %v378, 4
        %v415 = vrot.slane %v379, 3
        %v416 = vsel %vm224, %v415, %v414
        %v417 = vrot.slane %v380, 2
        %v418 = vsel %vm227, %v417, %v416
        %v419 = vrot.slane %v381, 1
        %v420 = vsel %vm230, %v419, %v418
        %v426 = vrot.slane %v383, 7
        %v427 = vsel %vm209, %v426, %v382
        %v428 = vrot.slane %v384, 6
        %v429 = vsel %vm212, %v428, %v427
        %v430 = vrot.slane %v385, 5
        %v431 = vsel %vm215, %v430, %v429
        %v432 = vsel %vm243, %v341, %v397
        %v433 = vsel %vm243, %v408, %v420
        %v434 = vsel %vm243, %v431, 0
        %436 = vmatpush.msra.mxu0 0.0
        %437 = vmatpush.msra.mxu0 0.0
        %438 = vmatpush.msra.mxu0 0.0
        %439 = vmatpush.msra.mxu0 0.0
        %440 = vmatpush.msra.mxu0 0.0
        %441 = vmatpush.msra.mxu0 0.0
        %442 = vmatpush.msra.mxu0 0.0
        %443 = vmatpush.msra.mxu0 0.0
        %444 = vmatpush.msra.mxu0 0.0
        %445 = vmatpush.msra.mxu0 0.0
        %446 = vmatpush.msra.mxu0 0.0
        %447 = vmatpush.msra.mxu0 0.0
        %448 = vmatpush.msra.mxu0 0.0
        %449 = vmatpush.msra.mxu0 %v434
        %450 = vmatpush.msra.mxu0 %v433
        %451 = vmatpush.msra.mxu0 %v432
        %452 = vmatmul.f32.gmra.mxu0 %v345
        %v453 = vpop.f32.mrf.mxu0
        %v454 = vadd.f32 %v249, %v453
        %455 = vdwg.mxu0
        %v456 = vmax.f32 %v454, 0.0
        %v457 = vld [vmem:[%s167 + $0xb] sm:$0x1]
        %v458 = vld [vmem:[%s167 + $0x1b] sm:$0x1]
        %v459 = vld [vmem:[%s167 + $0x2b] sm:$0x1]
        %v460 = vld [vmem:[%s167 + $0x3b] sm:$0x1]
        %v461 = vld [vmem:[%s167 + $0xc] sm:$0x1]
        %v462 = vld [vmem:[%s167 + $0x1c] sm:$0x1]
        %v463 = vld [vmem:[%s167 + $0x2c] sm:$0x1]
        %v464 = vld [vmem:[%s167 + $0x3c] sm:$0x1]
        %v465 = vld [vmem:[%s167 + $0xd] sm:$0x1]
        %v466 = vld [vmem:[%s167 + $0x1d] sm:$0x1]
        %v467 = vld [vmem:[%s167 + $0x2d] sm:$0x1]
        %v468 = vld [vmem:[%s167 + $0x3d] sm:$0x1]
        %v469 = vld [vmem:[%s167 + $0xe] sm:$0x1]
        %v470 = vld [vmem:[%s167 + $0x1e] sm:$0x1]
        %v471 = vld [vmem:[%s167 + $0x2e] sm:$0x1]
        %v472 = vld [vmem:[%s167 + $0x3e] sm:$0x1]
        %v478 = vrot.slane %v457, 4
        %v479 = vrot.slane %v458, 3
        %v480 = vsel %vm224, %v479, %v478
        %v481 = vrot.slane %v459, 2
        %v482 = vsel %vm227, %v481, %v480
        %v483 = vrot.slane %v460, 1
        %v484 = vsel %vm230, %v483, %v482
        %v490 = vrot.slane %v462, 7
        %v491 = vsel %vm209, %v490, %v461
        %v492 = vrot.slane %v463, 6
        %v493 = vsel %vm212, %v492, %v491
        %v494 = vrot.slane %v464, 5
        %v495 = vsel %vm215, %v494, %v493
        %v501 = vrot.slane %v465, 4
        %v502 = vrot.slane %v466, 3
        %v503 = vsel %vm224, %v502, %v501
        %v504 = vrot.slane %v467, 2
        %v505 = vsel %vm227, %v504, %v503
        %v506 = vrot.slane %v468, 1
        %v507 = vsel %vm230, %v506, %v505
        %v513 = vrot.slane %v470, 7
        %v514 = vsel %vm209, %v513, %v469
        %v515 = vrot.slane %v471, 6
        %v516 = vsel %vm212, %v515, %v514
        %v517 = vrot.slane %v472, 5
        %v518 = vsel %vm215, %v517, %v516
        %v519 = vsel %vm243, %v431, %v484
        %v520 = vsel %vm243, %v495, %v507
        %v521 = vsel %vm243, %v518, 0
        %523 = vmatpush.msra.mxu0 0.0
        %524 = vmatpush.msra.mxu0 0.0
        %525 = vmatpush.msra.mxu0 0.0
        %526 = vmatpush.msra.mxu0 0.0
        %527 = vmatpush.msra.mxu0 0.0
        %528 = vmatpush.msra.mxu0 0.0
        %529 = vmatpush.msra.mxu0 0.0
        %530 = vmatpush.msra.mxu0 0.0
        %531 = vmatpush.msra.mxu0 0.0
        %532 = vmatpush.msra.mxu0 0.0
        %533 = vmatpush.msra.mxu0 0.0
        %534 = vmatpush.msra.mxu0 0.0
        %535 = vmatpush.msra.mxu0 0.0
        %536 = vmatpush.msra.mxu0 %v521
        %537 = vmatpush.msra.mxu0 %v520
        %538 = vmatpush.msra.mxu0 %v519
        %539 = vmatmul.f32.gmra.mxu0 %v345
        %v540 = vpop.f32.mrf.mxu0
        %v541 = vadd.f32 %v249, %v540
        %542 = vdwg.mxu0
        %v543 = vmax.f32 %v541, 0.0
        %545 = vrot.lane.b32.xlu0 %v369, 64
        %v546 = vpop.permute.xlu0 %545
        %549 = vrot.lane.b32.xlu0 %v543, 64
        %v550 = vpop.permute.xlu0 %549
        %vm552 = vcmask 523264
        %v553 = vsel %vm552, %v279, %v546
        %v554 = vsel %vm552, %v456, %v550
        %555 = vst [vmem:[%s190] sm:$0xff] %v553
        %556 = vst [vmem:[%s190 + $0x8] sm:$0xff] %v554
        %s557 = sand.u32 %s96, 1
        %s558 = scalar_lea.sflag [#allocation4], %s557
        %s559 = sand.u32 %s96, 1
        %s560 = smul.addr %s559, 16
        %s561 = scalar_lea.vmem [#allocation5], %s560
        // Predicated region
        $region37: #{tpu_custom_call.1} parent=31 // pred_check
          %p562 = pneg %p106
        $region38: #{tpu_custom_call.1} parent=31 // pred_check_branch
          %564 = sbr.rel (%p562) target = $region40
        $region39: #{tpu_custom_call.1} parent=31 // pred_region
          %566 = vsyncadd %s558, 0
          %s567 = smul.addr %s20, 2
          %s568 = smul.addr %s567, 8
          %s569 = scalar_lea.hbm %s3, %s568
          %s571 = sshll.u32 %s561, 4
          %s572 = int_to_ptr.vmem [resolvable:$true] %s571
          %s573 = sshll.u32 %s569, 4
          %s574 = int_to_ptr.hbm [resolvable:$true] %s573
          %576 = dma.vmem_to_hbm [thread:$0]  %s572, 256, %s574, %s558
        $region40: #{tpu_custom_call.1} parent=31 // pred_fallthru
          _
      $region32: #{tpu_custom_call.1} parent=5 // pred_fallthru
        _
      %p577 = scmp.le.s32.totalorder 2, %s15
      // Predicated region
      $region41: #{tpu_custom_call.1} parent=5 // pred_check
        %p578 = pneg %p577
      $region42: #{tpu_custom_call.1} parent=5 // pred_check_branch
        %580 = sbr.rel (%p578) target = $region44
      $region43: #{tpu_custom_call.1} parent=5 // pred_region
        %s581 = ssub.s32 %s15, 2
        // Predicated region
        $region45: #{tpu_custom_call.1} parent=43 // pred_check
          %p582 = pneg %p112
        $region46: #{tpu_custom_call.1} parent=43 // pred_check_branch
          %584 = sbr.rel (%p582) target = $region48
        $region47: #{tpu_custom_call.1} parent=43 // pred_region
          %s585 = sand.u32 %s97, 1
          %s586 = scalar_lea.sflag [#allocation4], %s585
          %s587 = sand.u32 %s97, 1
          %s588 = smul.addr %s587, 16
          %s589 = scalar_lea.vmem [#allocation5], %s588
          %591 = dma.done %s586, 256
        $region48: #{tpu_custom_call.1} parent=43 // pred_fallthru
          _
      $region44: #{tpu_custom_call.1} parent=5 // pred_fallthru
        _
    $region6: #{tpu_custom_call.1} parent=1 // loop_footer
      %s19 = sadd.s32 1, %s15
    $region7: #{tpu_custom_call.1} parent=1 // loop_footer_branch
      %14 = sbr.rel target = $region3
    $region8: #{tpu_custom_call.1} parent=1 // loop_exit
      _
    %592 = vsyncpa [#allocation3], 1
    %s593 = scalar_lea.sflag [#allocation3], 1
    %594 = vsyncpa %s593, 1
    %595 = vsyncpa [#allocation4], 1
    %s596 = scalar_lea.sflag [#allocation4], 1
    %597 = vsyncpa %s596, 1

</llo_original>
